<compile_context>
chip_gen: v6e
topology: v6e:2x2x1
jax: 0.10.0
libtpu: 0.0.40
codegen_flags: <defaults>
</compile_context>

<pallas_src>
import functools

import jax
import jax.numpy as jnp
from jax import lax
from jax.experimental import pallas as pl
from jax.experimental.pallas import tpu as pltpu

_LANES = 128
_SUBLANES = 8


def _cdiv(a, b):
    return -(-a // b)


def _round_up(a, b):
    return _cdiv(a, b) * b


def _num_tensorcores():
    """2 TensorCores per chip on v7x; 1 on v5e/v6e (unknown -> 1, always safe)."""
    try:
        kind = (getattr(jax.devices()[0], "device_kind", "") or "").lower()
    except Exception:
        return 1
    return 2 if "v7" in kind else 1


def _sublane_multiple(*dtypes):
    """Sub-32-bit dtypes pack along sublanes: 16 rows/tile for 16-bit, 32 for 8-bit."""
    packing = 1
    for dt in dtypes:
        packing = max(packing, 4 // max(1, jnp.dtype(dt).itemsize))
    return _SUBLANES * packing


# ---------------------------------------------------------------------------
# Kernel bodies
# ---------------------------------------------------------------------------

def _mse_stream_kernel(p_ref, t_ref, out_ref, acc_ref, *, block_n,
                       tiles_per_core, n_valid, needs_mask):
    """Streaming sum of (p - t)^2 over (block_n, HW) roi blocks.

    grid = (num_cores, tiles_per_core); each core accumulates its own partial
    in a (1,1) f32 VMEM scratch and writes it (broadcast, lane-dense) into its
    own (1, 8, 128) output block at its final inner step.
    """
    c = pl.program_id(0)
    i = pl.program_id(1)

    @pl.when(i == 0)
    def _init():
        acc_ref[...] = jnp.zeros_like(acc_ref)

    d = p_ref[...].astype(jnp.float32) - t_ref[...].astype(jnp.float32)
    sq = d * d
    if needs_mask:
        # Only boundary / duplicated tiles contain rois >= n_valid; their VMEM
        # contents are unspecified, so select 0 BEFORE accumulating (select does
        # not propagate NaN/Inf from the discarded branch).
        start = (c * tiles_per_core + i) * block_n
        row = lax.broadcasted_iota(jnp.int32, sq.shape, 0)
        sq = jnp.where(row < (n_valid - start), sq, 0.0)

    # VALU tree-adds across vregs + one small intra-vreg XLU reduce per step;
    # both hide under the HBM DMA of the next block.
    acc_ref[...] += jnp.sum(sq, axis=(0, 1), keepdims=True)

    @pl.when(i == tiles_per_core - 1)
    def _fin():
        out_ref[...] = jnp.broadcast_to(
            acc_ref[...].reshape(1, 1, 1), (1, _SUBLANES, _LANES))


def _gather_mse_kernel(label_prefetch_ref, p_ref, t_ref, out_ref, acc_ref):
    """One roi per grid step; the class-channel gather happens in the pred
    BlockSpec index_map via the scalar-prefetched labels (label ref unused here)."""
    i = pl.program_id(0)

    @pl.when(i == 0)
    def _init():
        acc_ref[...] = jnp.zeros_like(acc_ref)

    d = p_ref[...].astype(jnp.float32) - t_ref[...].astype(jnp.float32)
    acc_ref[...] += jnp.sum(d * d, axis=(0, 1), keepdims=True)

    @pl.when(i == pl.num_programs(0) - 1)
    def _fin():
        out_ref[...] = jnp.broadcast_to(acc_ref[...], (_SUBLANES, _LANES))


# ---------------------------------------------------------------------------
# pallas_call wrappers
# ---------------------------------------------------------------------------

def _sq_err_sum_stream(pred_slice2d, target2d, *, num_cores, target_block_bytes):
    """Sum of (p - t)^2 over a (N, HW) pair, streamed in the original dtype."""
    n, hw = pred_slice2d.shape
    itemsize = max(jnp.dtype(pred_slice2d.dtype).itemsize,
                   jnp.dtype(target2d.dtype).itemsize)
    sub_mult = _sublane_multiple(pred_slice2d.dtype, target2d.dtype)

    # Lane-padded VMEM footprint per roi row (per input buffer).
    row_bytes = _round_up(hw, _LANES) * itemsize
    rows_fit = max(1, int(target_block_bytes) // row_bytes)
    if rows_fit >= n:
        block_n = n                                  # full-extent block: always legal
    else:
        block_n = max(sub_mult, (rows_fit // sub_mult) * sub_mult)
        if block_n >= n:
            block_n = n
    num_tiles = _cdiv(n, block_n)
    if num_tiles < 2:
        num_cores = 1                                # nothing to split
    tiles_per_core = _cdiv(num_tiles, num_cores)
    total_tiles = num_cores * tiles_per_core

    clamp_tiles = total_tiles > num_tiles            # duplicated (fully masked) tiles
    needs_mask = (total_tiles * block_n) != n        # overhang and/or duplicates

    def tile_map(c, i):
        t = c * tiles_per_core + i
        if clamp_tiles:
            # Keep the DMA in-bounds; the in-kernel mask zeroes the duplicate.
            t = jnp.minimum(t, num_tiles - 1)
        return (t, 0)

    kernel = functools.partial(
        _mse_stream_kernel, block_n=block_n, tiles_per_core=tiles_per_core,
        n_valid=n, needs_mask=needs_mask)

    if num_cores > 1:
        core_sem = getattr(pltpu, "CORE_PARALLEL",
                           getattr(pltpu, "PARALLEL", "parallel"))
        arb_sem = getattr(pltpu, "ARBITRARY", "arbitrary")
    else:
        core_sem, arb_sem = "arbitrary", "arbitrary"

    grid_spec = pltpu.PrefetchScalarGridSpec(
        num_scalar_prefetch=0,
        grid=(num_cores, tiles_per_core),
        in_specs=[pl.BlockSpec((block_n, hw), tile_map),
                  pl.BlockSpec((block_n, hw), tile_map)],
        out_specs=pl.BlockSpec((1, _SUBLANES, _LANES), lambda c, i: (c, 0, 0)),
        scratch_shapes=[pltpu.VMEM((1, 1), jnp.float32)],
    )

    n_elem = n * hw
    cost = pl.CostEstimate(
        flops=3 * n_elem,
        transcendentals=0,
        bytes_accessed=n_elem * (jnp.dtype(pred_slice2d.dtype).itemsize
                                 + jnp.dtype(target2d.dtype).itemsize))

    partials = pl.pallas_call(
        kernel,
        out_shape=jax.ShapeDtypeStruct((num_cores, _SUBLANES, _LANES), jnp.float32),
        grid_spec=grid_spec,
        compiler_params=pltpu.CompilerParams(
            dimension_semantics=(core_sem, arb_sem)),
        cost_estimate=cost,
    )(pred_slice2d, target2d)

    return jnp.sum(partials[:, 0, 0])


def _sq_err_sum_gather(pred, target, label):
    """Sum of (pred[i, label[i]] - target[i])^2 with the class gather done by
    the BlockSpec index_map (scalar-prefetched labels): exactly two HBM reads
    of N*H*W elements each, no gather materialization, no padding."""
    n, c, h, w = pred.shape

    p_spec = pl.BlockSpec((None, None, h, w), lambda i, lbl: (i, lbl[i], 0, 0))
    t_spec = pl.BlockSpec((None, h, w), lambda i, lbl: (i, 0, 0))

    grid_spec = pltpu.PrefetchScalarGridSpec(
        num_scalar_prefetch=1,
        grid=(n,),
        in_specs=[p_spec, t_spec],
        out_specs=pl.BlockSpec((_SUBLANES, _LANES), lambda i, lbl: (0, 0)),
        scratch_shapes=[pltpu.VMEM((1, 1), jnp.float32)],
    )

    n_elem = n * h * w
    cost = pl.CostEstimate(
        flops=3 * n_elem,
        transcendentals=0,
        bytes_accessed=n_elem * (jnp.dtype(pred.dtype).itemsize
                                 + jnp.dtype(target.dtype).itemsize))

    out = pl.pallas_call(
        _gather_mse_kernel,
        out_shape=jax.ShapeDtypeStruct((_SUBLANES, _LANES), jnp.float32),
        grid_spec=grid_spec,
        compiler_params=pltpu.CompilerParams(dimension_semantics=("arbitrary",)),
        cost_estimate=cost,
    )(label, pred, target)
    return out[0, 0]


def centermap_loss(pred, target, label, loss_weight=1.0,
                   gather_in_kernel=None, target_block_bytes=None,
                   num_cores=None):
    """Pallas implementation of CenterMapLoss(use_mask=True).forward.

    pred:   (N, C, H, W) float
    target: (N, H, W)    float
    label:  (N,)         int
    returns (1,) float32
    """
    N, C, H, W = pred.shape
    assert target.shape == (N, H, W)
    assert label.shape == (N,)

    # torch `pred[inds, label]` raises on out-of-range labels; here we clamp
    # (this also matches jnp.take_along_axis's silent clamping).
    label = jnp.clip(label.astype(jnp.int32), 0, C - 1)

    hw = H * W
    if gather_in_kernel is None:
        # Large per-roi maps: in-kernel gather reaches the minimal 2-read HBM
        # traffic.  Small maps: the ~0.35us per-roi grid-step overhead would
        # dominate, so gather in the wrapper and stream big lane-dense blocks.
        gather_in_kernel = hw >= 32768

    if gather_in_kernel:
        total = _sq_err_sum_gather(pred, target, label)
    else:
        if num_cores is None:
            num_cores = _num_tensorcores()
        if target_block_bytes is None:
            # ~4 MiB/input/step on v7x (2 TCs), ~2 MiB elsewhere: fits default
            # scoped VMEM with double-buffered inputs on every generation.
            target_block_bytes = (4 << 20) if num_cores > 1 else (2 << 20)
        # pred[i, label[i]] -> (N, H, W), kept in the original dtype (the kernel
        # upcasts to f32 when it computes).  No jnp.pad and no f32 copy.
        # NOTE: torch's .squeeze(1) only matters when H == 1; the mean is the
        # same either way.
        pred_slice = jnp.take_along_axis(
            pred, label.reshape(N, 1, 1, 1), axis=1)[:, 0]
        total = _sq_err_sum_stream(
            pred_slice.reshape(N, hw), target.reshape(N, hw),
            num_cores=int(num_cores),
            target_block_bytes=int(target_block_bytes))

    # MSE 'mean' reduction over the true element count + loss_weight.
    return (total * (float(loss_weight) / float(N * hw))).reshape(1)


class CenterMapLoss:
    """JAX/Pallas port of mmdet CenterMapLoss (use_mask=True path)."""

    def __init__(self, use_mask_weight=False, use_mask=True,
                 reduction="mean", loss_weight=1.0):
        assert use_mask_weight is False or use_mask is False
        assert use_mask, "only the mask_centermap (use_mask=True) path is implemented"
        # TODO(synk): mask_weight_centermap (per-pixel mask_weights) path not implemented.
        self.reduction = reduction
        self.loss_weight = loss_weight

    def __call__(self, cls_score, label, weight=None, avg_factor=None,
                 reduction_override=None):
        assert reduction_override in (None, "none", "mean", "sum")
        reduction = reduction_override if reduction_override else self.reduction
        assert reduction == "mean" and avg_factor is None
        # forward(cls_score, label, weight) -> mask_centermap(pred=cls_score,
        #                                                     target=label,
        #                                                     label=weight)
        return centermap_loss(cls_score, label, weight,
                              loss_weight=self.loss_weight)


if __name__ == "__main__":
    key = jax.random.PRNGKey(0)
    ks = jax.random.split(key, 9)

    # --- 1) primary: small shapes (4 rois, 4 classes, 16x16), f32, streaming path ---
    N, C, H, W = 4, 4, 16, 16
    pred = jax.random.normal(ks[0], (N, C, H, W), dtype=jnp.float32)
    target = jax.random.normal(ks[1], (N, H, W), dtype=jnp.float32)
    labels = jax.random.randint(ks[2], (N,), 0, C, dtype=jnp.int32)

    loss_mod = CenterMapLoss(use_mask=True, loss_weight=1.0)
    # forward(cls_score=pred, label=target_map, weight=class_labels)
    out = jax.block_until_ready(loss_mod(pred, target, labels))
    ref = jnp.mean((pred[jnp.arange(N), labels] - target) ** 2)[None]
    assert out.shape == (1,)
    assert jnp.allclose(out, ref, rtol=1e-5, atol=1e-6), (out, ref)

    # --- 2) ragged bf16 shapes: multi-tile grid, masked final tile, native-dtype DMA
    #        (and the 2-TC split + CORE_PARALLEL engage automatically on v7x) ---
    N2, C2, H2, W2 = 37, 3, 9, 31
    pred2 = jax.random.normal(ks[3], (N2, C2, H2, W2), dtype=jnp.bfloat16)
    target2 = jax.random.normal(ks[4], (N2, H2, W2), dtype=jnp.bfloat16)
    labels2 = jax.random.randint(ks[5], (N2,), 0, C2, dtype=jnp.int32)
    out2 = jax.block_until_ready(
        centermap_loss(pred2, target2, labels2, loss_weight=0.5,
                       target_block_bytes=16384))
    p2 = pred2[jnp.arange(N2), labels2].astype(jnp.float32)
    t2 = target2.astype(jnp.float32)
    ref2 = 0.5 * jnp.mean((p2 - t2) ** 2)[None]
    assert out2.shape == (1,)
    assert jnp.allclose(out2, ref2, rtol=1e-4, atol=1e-5), (out2, ref2)

    # --- 3) in-kernel gather path (scalar-prefetched labels drive the channel
    #        index_map); forced on small shapes to exercise it ---
    N3, C3, H3, W3 = 6, 5, 16, 16
    pred3 = jax.random.normal(ks[6], (N3, C3, H3, W3), dtype=jnp.float32)
    target3 = jax.random.normal(ks[7], (N3, H3, W3), dtype=jnp.float32)
    labels3 = jax.random.randint(ks[8], (N3,), 0, C3, dtype=jnp.int32)
    out3 = jax.block_until_ready(
        centermap_loss(pred3, target3, labels3, loss_weight=1.0,
                       gather_in_kernel=True))
    ref3 = jnp.mean((pred3[jnp.arange(N3), labels3] - target3) ** 2)[None]
    assert out3.shape == (1,)
    assert jnp.allclose(out3, ref3, rtol=1e-5, atol=1e-6), (out3, ref3)

    print("KERNEL_OK")
</pallas_src>

<mosaic_0001>
module attributes {stable_mosaic.version = 11 : i64} {
  func.func @_mse_stream_kernel(%arg0: i32, %arg1: i32, %arg2: memref<4x256xf32, #tpu.memory_space<vmem>>, %arg3: memref<4x256xf32, #tpu.memory_space<vmem>>, %arg4: memref<1x8x128xf32, #tpu.memory_space<vmem>>, %arg5: memref<1x1xf32, #tpu.memory_space<vmem>>) attributes {dimension_semantics = [#tpu.dimension_semantics<arbitrary>, #tpu.dimension_semantics<arbitrary>], iteration_bounds = array<i64: 1, 1>, scalar_prefetch = 0 : i64, scratch_operands = 1 : i64, tpu.core_type = #tpu.core_type<tc>, window_params = [{transform_indices = @transform_0, window_bounds = array<i64: 4, 256>}, {transform_indices = @transform_1, window_bounds = array<i64: 4, 256>}, {transform_indices = @transform_2, window_bounds = array<i64: 1, 8, 128>}]} {
    %c0_i32 = arith.constant 0 : i32
    %0 = arith.cmpi eq, %arg1, %c0_i32 : i32
    %1 = arith.extui %0 : i1 to i32
    %c0_i32_0 = arith.constant 0 : i32
    %2 = arith.cmpi ne, %1, %c0_i32_0 : i32
    scf.if %2 {
      %cst_10 = arith.constant 0.000000e+00 : f32
      %18 = vector.broadcast %cst_10 : f32 to vector<1x1xf32>
      %c0_11 = arith.constant 0 : index
      %c0_12 = arith.constant 0 : index
      %19 = vector.load %arg5[%c0_11, %c0_12] : memref<1x1xf32, #tpu.memory_space<vmem>>, vector<1x1xf32>
      tpu.vector_store %arg5[%c0_11, %c0_12], %18 {strides = array<i32>} : memref<1x1xf32, #tpu.memory_space<vmem>>, vector<1x1xf32>,
    } else {
    }
    %c0 = arith.constant 0 : index
    %c0_1 = arith.constant 0 : index
    %3 = vector.load %arg2[%c0, %c0_1] : memref<4x256xf32, #tpu.memory_space<vmem>>, vector<4x256xf32>
    %c0_2 = arith.constant 0 : index
    %c0_3 = arith.constant 0 : index
    %4 = vector.load %arg3[%c0_2, %c0_3] : memref<4x256xf32, #tpu.memory_space<vmem>>, vector<4x256xf32>
    %5 = arith.subf %3, %4 : vector<4x256xf32>
    %6 = arith.mulf %5, %5 : vector<4x256xf32>
    %c0_4 = arith.constant 0 : index
    %c0_5 = arith.constant 0 : index
    %7 = vector.load %arg5[%c0_4, %c0_5] : memref<1x1xf32, #tpu.memory_space<vmem>>, vector<1x1xf32>
    %8 = vector.shape_cast %6 : vector<4x256xf32> to vector<1x4x256xf32>
    %cst = arith.constant dense<0.000000e+00> : vector<1xf32>
    %9 = vector.multi_reduction <add>, %8, %cst [1, 2] : vector<1x4x256xf32> to vector<1xf32>
    %10 = vector.shape_cast %9 : vector<1xf32> to vector<1x1x1xf32>
    %11 = vector.extract %10[0, 0, 0] : f32 from vector<1x1x1xf32>
    %12 = vector.broadcast %11 : f32 to vector<1x1xf32>
    %13 = arith.addf %7, %12 : vector<1x1xf32>
    %c0_6 = arith.constant 0 : index
    %c0_7 = arith.constant 0 : index
    %14 = vector.load %arg5[%c0_6, %c0_7] : memref<1x1xf32, #tpu.memory_space<vmem>>, vector<1x1xf32>
    tpu.vector_store %arg5[%c0_6, %c0_7], %13 {strides = array<i32>} : memref<1x1xf32, #tpu.memory_space<vmem>>, vector<1x1xf32>,
    %c0_i32_8 = arith.constant 0 : i32
    %15 = arith.cmpi eq, %arg1, %c0_i32_8 : i32
    %16 = arith.extui %15 : i1 to i32
    %c0_i32_9 = arith.constant 0 : i32
    %17 = arith.cmpi ne, %16, %c0_i32_9 : i32
    scf.if %17 {
      %c0_10 = arith.constant 0 : index
      %c0_11 = arith.constant 0 : index
      %18 = vector.load %arg5[%c0_10, %c0_11] : memref<1x1xf32, #tpu.memory_space<vmem>>, vector<1x1xf32>
      %19 = vector.shape_cast %18 : vector<1x1xf32> to vector<1x1x1xf32>
      %20 = vector.shape_cast %19 : vector<1x1x1xf32> to vector<1x1x1xf32>
      %21 = vector.broadcast %20 : vector<1x1x1xf32> to vector<1x8x128xf32>
      %c0_12 = arith.constant 0 : index
      %c0_13 = arith.constant 0 : index
      %c0_14 = arith.constant 0 : index
      %22 = vector.load %arg4[%c0_12, %c0_13, %c0_14] : memref<1x8x128xf32, #tpu.memory_space<vmem>>, vector<1x8x128xf32>
      tpu.vector_store %arg4[%c0_12, %c0_13, %c0_14], %21 {strides = array<i32>} : memref<1x8x128xf32, #tpu.memory_space<vmem>>, vector<1x8x128xf32>,
    } else {
    }
    return
  }
  func.func @transform_0(%arg0: i32, %arg1: i32) -> (i32, i32) {
    %c1_i32 = arith.constant 1 : i32
    %0 = arith.muli %arg0, %c1_i32 : i32
    %1 = arith.addi %0, %arg1 : i32
    %c0_i32 = arith.constant 0 : i32
    %c0_i32_0 = arith.constant 0 : i32
    return %1, %c0_i32 : i32, i32
  }
  func.func @transform_1(%arg0: i32, %arg1: i32) -> (i32, i32) {
    %c1_i32 = arith.constant 1 : i32
    %0 = arith.muli %arg0, %c1_i32 : i32
    %1 = arith.addi %0, %arg1 : i32
    %c0_i32 = arith.constant 0 : i32
    %c0_i32_0 = arith.constant 0 : i32
    return %1, %c0_i32 : i32, i32
  }
  func.func @transform_2(%arg0: i32, %arg1: i32) -> (i32, i32, i32) {
    %c0_i32 = arith.constant 0 : i32
    %c0_i32_0 = arith.constant 0 : i32
    %c0_i32_1 = arith.constant 0 : i32
    return %arg0, %c0_i32, %c0_i32_0 : i32, i32, i32
  }
}

</mosaic_0001>

<llo_original>
// kernel: tpu_custom_call.1
$region0: #{tpu_custom_call.1}
  #allocation0 [shape = 'u32[]', space=smem, size = 0x4, offset = 0x4, fixed_abs, tag = 'smem constant byte address 0x4 - core index']
  #allocation1 [shape = 'u32[144,128]{1,0:T(1,128)}', space=vmem, size = 0x12000, scoped, tag = 'internal scratch']
  #allocation2 [shape = 'f32[1,1]{1,0:T(1,128)}', space=vmem, size = 0x200, scoped, tag = 'scratch operand']
  %s0 = inlined_call_operand.hbm [shape: f32[4,256], index: 0, kind: input, shape index: {}]
  %s1 = inlined_call_operand.hbm [shape: f32[4,256], index: 1, kind: input, shape index: {}]
  %s2 = inlined_call_operand.hbm [shape: f32[1,8,128], index: 2, kind: output, shape index: {}]
  %s3 = sld [smem:[#allocation0]]
  $region34: #{tpu_custom_call.1} parent=0
    _
  %s5 = ssub.s32 1, %s3
  %s6 = scalar_select 0, %s5, %s3
  $region1: #{tpu_custom_call.1} parent=0
    #allocation3 [shape = 'u8[4096]{0}', space=vmem, size = 0x1000, scoped, tag = 'input window, operand 0, single buffered']
    #allocation4 [shape = 's32[1]{0}', space=sflag, size = 0x4, scoped, tag = 'scoped memory for tpu_custom_call.1']
    #allocation5 [shape = 's32[1]{0}', space=sflag, size = 0x4, scoped, tag = 'scoped memory for tpu_custom_call.1']
    #allocation6 [shape = 'u8[4096]{0}', space=vmem, size = 0x1000, scoped, tag = 'input window, operand 1, single buffered']
    #allocation7 [shape = 's32[1]{0}', space=sflag, size = 0x4, scoped, tag = 'scoped memory for tpu_custom_call.1']
    #allocation8 [shape = 'u8[4096]{0}', space=vmem, size = 0x1000, scoped, tag = 'output window, operand 0, single buffered']
    %7 = vsyncpa [#allocation4], 0
    %8 = vsyncpa [#allocation7], 0
    %9 = vsyncpa [#allocation5], 0
    // Predicated region
    $region2: #{tpu_custom_call.1} parent=1 // pred_check
      _
    $region3: #{tpu_custom_call.1} parent=1 // pred_check_branch
      %11 = sbr.rel (0) target = $region5
    $region4: #{tpu_custom_call.1} parent=1 // pred_region
      %s12 = sadd.s32 0, 0
      %s14 = ssub.s32 128, 128
      %15 = vsyncadd [#allocation4], %s14
      %s16 = smul.addr %s12, 2
      %s17 = smul.addr %s16, 64
      %s18 = scalar_lea.hbm %s0, %s17
      %s20 = sshll.u32 [#allocation3], 4
      %s21 = int_to_ptr.vmem [resolvable:$true] %s20
      %23 = dma.hbm_to_vmem [thread:$0]  %s18, 128, %s21, [#allocation4]
    $region5: #{tpu_custom_call.1} parent=1 // pred_fallthru
      _
    // Predicated region
    $region6: #{tpu_custom_call.1} parent=1 // pred_check
      _
    $region7: #{tpu_custom_call.1} parent=1 // pred_check_branch
      %25 = sbr.rel (0) target = $region9
    $region8: #{tpu_custom_call.1} parent=1 // pred_region
      %s26 = sadd.s32 0, 0
      %s28 = ssub.s32 128, 128
      %29 = vsyncadd [#allocation7], %s28
      %s30 = smul.addr %s26, 2
      %s31 = smul.addr %s30, 64
      %s32 = scalar_lea.hbm %s1, %s31
      %s34 = sshll.u32 [#allocation6], 4
      %s35 = int_to_ptr.vmem [resolvable:$true] %s34
      %37 = dma.hbm_to_vmem [thread:$0]  %s32, 128, %s35, [#allocation7]
    $region9: #{tpu_custom_call.1} parent=1 // pred_fallthru
      _
    // Predicated region
    $region10: #{tpu_custom_call.1} parent=1 // pred_check
      _
    $region11: #{tpu_custom_call.1} parent=1 // pred_check_branch
      %39 = sbr.rel (0) target = $region13
    $region12: #{tpu_custom_call.1} parent=1 // pred_region
      %40 = dma.done [#allocation4], 128
    $region13: #{tpu_custom_call.1} parent=1 // pred_fallthru
      _
    // Predicated region
    $region14: #{tpu_custom_call.1} parent=1 // pred_check
      _
    $region15: #{tpu_custom_call.1} parent=1 // pred_check_branch
      %42 = sbr.rel (0) target = $region17
    $region16: #{tpu_custom_call.1} parent=1 // pred_region
      %43 = dma.done [#allocation7], 128
    $region17: #{tpu_custom_call.1} parent=1 // pred_fallthru
      _
    %s44 = sadd.s32 0, 0
    %s45 = sadd.s32 0, 0
    %p46 = scmp.eq.s32.totalorder 0, 0
    // Predicated region
    $region18: #{tpu_custom_call.1} parent=1 // pred_check
      %p47 = pneg %p46
    $region19: #{tpu_custom_call.1} parent=1 // pred_check_branch
      %49 = sbr.rel (%p47) target = $region21
    $region20: #{tpu_custom_call.1} parent=1 // pred_region
      %vm50 = vcmask 0
      %51 = vst.msk [vmem:[#allocation2] sm:$0x1] %vm50, 0.0
    $region21: #{tpu_custom_call.1} parent=1 // pred_fallthru
      _
    %v52 = vld [vmem:[#allocation3] sm:$0xff]
    %v53 = vld [vmem:[#allocation6] sm:$0xff]
    %v54 = vsub.f32 %v52, %v53
    %v55 = vmul.f32 %v54, %v54
    %v56 = vld [vmem:[#allocation2] sm:$0x1]
    %v58 = vcombine.high %v55, %v55
    %vm60 = vcmask 1043456
    %v61 = vsel %vm60, %v55, 0.0
    %v62 = vsel %vm60, %v58, 0.0
    %v63 = vadd.f32 %v61, %v62
    %64 = vadd.xlane.f32.xlu0 %v63
    %v65 = vpop.xlane.xlu0 %64
    %v66 = vrot.slane %v65, 4
    %v67 = vadd.f32 %v65, %v66
    %v68 = vrot.slane %v67, 2
    %v69 = vadd.f32 %v67, %v68
    %v70 = vrot.slane %v69, 1
    %v71 = vadd.f32 %v69, %v70
    %s72 = vtos %v71
    %v73 = vstv %s72
    %v74 = vadd.f32 %v56, %v73
    %vm75 = vcmask 0
    %76 = vst.msk [vmem:[#allocation2] sm:$0x1] %vm75, %v74
    // Predicated region
    $region22: #{tpu_custom_call.1} parent=1 // pred_check
      %p77 = pneg %p46
    $region23: #{tpu_custom_call.1} parent=1 // pred_check_branch
      %79 = sbr.rel (%p77) target = $region25
    $region24: #{tpu_custom_call.1} parent=1 // pred_region
      %v80 = vld [vmem:[#allocation2] sm:$0x1]
      %v82 = vlaneseq
      %v83 = vshrl.u32 %v82, 7
      %v84 = vsub.s32 0, %v83
      %v85 = vrot.slane %v80, %v84
      %86 = vset.pattern.permute.xlu0 0
      %87 = vperm.xlu0 %86, %v85
      %v88 = vpop.permute.xlu0 %87
      %90 = vst [vmem:[#allocation8] sm:$0xff] %v88
    $region25: #{tpu_custom_call.1} parent=1 // pred_fallthru
      _
    // Predicated region
    $region26: #{tpu_custom_call.1} parent=1 // pred_check
      _
    $region27: #{tpu_custom_call.1} parent=1 // pred_check_branch
      %92 = sbr.rel (0) target = $region29
    $region28: #{tpu_custom_call.1} parent=1 // pred_region
      %s94 = ssub.s32 128, 128
      %95 = vsyncadd [#allocation5], %s94
      %s97 = sshll.u32 [#allocation8], 4
      %s98 = int_to_ptr.vmem [resolvable:$true] %s97
      %100 = dma.vmem_to_hbm [thread:$0]  %s98, 128, %s2, [#allocation5]
    $region29: #{tpu_custom_call.1} parent=1 // pred_fallthru
      _
    // Predicated region
    $region30: #{tpu_custom_call.1} parent=1 // pred_check
      _
    $region31: #{tpu_custom_call.1} parent=1 // pred_check_branch
      %102 = sbr.rel (0) target = $region33
    $region32: #{tpu_custom_call.1} parent=1 // pred_region
      %103 = dma.done [#allocation5], 128
    $region33: #{tpu_custom_call.1} parent=1 // pred_fallthru
      _
    %104 = vsyncpa [#allocation4], 1
    %105 = vsyncpa [#allocation7], 1
    %106 = vsyncpa [#allocation5], 1

</llo_original>
